<compile_context>
chip_gen: v5e
topology: v5e:2x2
jax: 0.10.0
libtpu: 0.0.40
codegen_flags: <defaults>
</compile_context>

<pallas_src>
import functools

import jax
import jax.numpy as jnp
from jax.experimental import pallas as pl
from jax.experimental.pallas import tpu as pltpu

_LANES = 128
_TARGET_BLOCK_BYTES = 4 * 1024 * 1024   # per-input per-block DMA granule
_CHUNK_ROWS = 1024                      # compute sub-chunk (bounds VMEM temps)
_ACC_ROWS = 64                          # wide accumulator -> VALU ILP
_VMEM_LIMIT_BYTES = 32 * 1024 * 1024    # 2 in x 2 buf x 4 MiB + temps, safe v5e..v7x


def _sublane_multiple(dtype) -> int:
    # minimal second-minor tile multiple: f32 -> 8, bf16 -> 16, int8/fp8 -> 32
    itemsize = jnp.dtype(dtype).itemsize
    return max(8, 32 // itemsize)


def _round_up(x: int, m: int) -> int:
    return ((x + m - 1) // m) * m


def _loss_kernel(pred_ref, tgt_ref, out_ref, acc_ref, *,
                 use_l2, block_rows, chunk_rows, acc_rows, rows, needs_mask):
    i = pl.program_id(0)
    nb = pl.num_programs(0)

    @pl.when(i == 0)
    def _():
        acc_ref[...] = jnp.zeros_like(acc_ref)

    def accumulate(masked):
        # Unrolled loop over compute sub-chunks of the DMA block.  Keeps the
        # elementwise temporaries bounded (~chunk_rows x 128 f32) and feeds the
        # wide (acc_rows, 128) accumulator with independent add chains.
        for c in range(block_rows // chunk_rows):
            r0 = c * chunk_rows
            p = pred_ref[r0:r0 + chunk_rows, :].astype(jnp.float32)
            t = tgt_ref[r0:r0 + chunk_rows, :].astype(jnp.float32)
            d = p - t
            v = d * d if use_l2 else jnp.abs(d)
            if masked:
                # Zero rows past the logical end (partial edge block reads
                # unspecified data; jnp.where does not propagate NaN/inf from
                # the masked branch).
                row_ids = (i * block_rows + r0) + jax.lax.broadcasted_iota(
                    jnp.int32, (chunk_rows, _LANES), 0)
                v = jnp.where(row_ids < rows, v, 0.0)
            acc_ref[...] += jnp.sum(
                v.reshape(chunk_rows // acc_rows, acc_rows, _LANES), axis=0)

    if needs_mask:
        # Only the last block can contain rows past `rows`; interior blocks
        # take the mask-free fast path.
        is_edge = i == nb - 1

        @pl.when(is_edge)
        def _():
            accumulate(masked=True)

        @pl.when(jnp.logical_not(is_edge))
        def _():
            accumulate(masked=False)
    else:
        accumulate(masked=False)

    @pl.when(i == nb - 1)
    def _():
        out_ref[...] = jnp.sum(
            acc_ref[...].reshape(acc_rows // 8, 8, _LANES), axis=0)


def pallas_get_loss(pred, target, type="L2_loss", reduction="mean"):
    """Equivalent of the PyTorch get_loss module forward.

    type: 'L2_loss' -> MSELoss, anything else -> L1Loss.
    reduction: 'mean' or 'sum'.
    """
    assert pred.shape == target.shape, "pred/target must have identical shapes"
    pred = jnp.asarray(pred)
    target = jnp.asarray(target)
    n = pred.size
    use_l2 = (type == "L2_loss")

    p = jnp.ravel(pred)    # contiguous reshape: free, keeps native dtype
    t = jnp.ravel(target)  # (cast to f32 happens inside the kernel)

    rows = n // _LANES
    tail = n - rows * _LANES

    # Tail (< 128 elements): negligible, handled with plain JAX.
    if tail:
        dp = p[rows * _LANES:].astype(jnp.float32) \
            - t[rows * _LANES:].astype(jnp.float32)
        tail_sum = jnp.sum(dp * dp) if use_l2 else jnp.sum(jnp.abs(dp))
    else:
        tail_sum = jnp.float32(0.0)

    if rows == 0:
        # Tiny input: everything fits in the tail path (no kernel launch).
        total = tail_sum
    else:
        if tail:
            p_main, t_main = p[: rows * _LANES], t[: rows * _LANES]
        else:
            p_main, t_main = p, t
        p2 = p_main.reshape(rows, _LANES)
        t2 = t_main.reshape(rows, _LANES)

        itemsize = jnp.dtype(p2.dtype).itemsize
        sub = _sublane_multiple(p2.dtype)
        cap_rows = _TARGET_BLOCK_BYTES // (_LANES * itemsize)  # 8192 f32 / 16384 bf16

        if rows >= _CHUNK_ROWS:
            block_rows = min(cap_rows, _round_up(rows, _CHUNK_ROWS))
            chunk_rows = _CHUNK_ROWS
        else:
            block_rows = _round_up(rows, sub)
            chunk_rows = block_rows
        acc_rows = _ACC_ROWS if chunk_rows % _ACC_ROWS == 0 else chunk_rows

        num_blocks = pl.cdiv(rows, block_rows)
        needs_mask = (num_blocks * block_rows) != rows

        kernel = functools.partial(
            _loss_kernel, use_l2=use_l2, block_rows=block_rows,
            chunk_rows=chunk_rows, acc_rows=acc_rows,
            rows=rows, needs_mask=needs_mask)

        n_main = rows * _LANES
        cost = pl.CostEstimate(
            flops=3 * n_main, transcendentals=0,
            bytes_accessed=2 * n_main * itemsize + 8 * _LANES * 4)

        partial_out = pl.pallas_call(
            kernel,
            out_shape=jax.ShapeDtypeStruct((8, _LANES), jnp.float32),
            grid_spec=pltpu.PrefetchScalarGridSpec(
                num_scalar_prefetch=0,
                grid=(num_blocks,),
                in_specs=[
                    pl.BlockSpec((block_rows, _LANES), lambda i: (i, 0)),
                    pl.BlockSpec((block_rows, _LANES), lambda i: (i, 0)),
                ],
                out_specs=pl.BlockSpec((8, _LANES), lambda i: (0, 0)),
                scratch_shapes=[pltpu.VMEM((acc_rows, _LANES), jnp.float32)],
            ),
            compiler_params=pltpu.CompilerParams(
                dimension_semantics=("arbitrary",),
                vmem_limit_bytes=_VMEM_LIMIT_BYTES,
                allow_input_fusion=[True, True] if tail else None,
            ),
            cost_estimate=cost,
        )(p2, t2)

        total = jnp.sum(partial_out) + tail_sum

    if reduction == "mean":
        total = total / jnp.float32(n)
    return total


if __name__ == "__main__":
    key = jax.random.PRNGKey(0)
    k1, k2, k3, k4, k5, k6 = jax.random.split(key, 6)

    # small NCHW-like shapes consistent with a typical prediction/target pair
    pred = jax.random.normal(k1, (2, 4, 16, 16), dtype=jnp.float32)
    target = jax.random.normal(k2, (2, 4, 16, 16), dtype=jnp.float32)

    # L2 (MSE, mean) — the module's default configuration
    loss_l2 = pallas_get_loss(pred, target, type="L2_loss", reduction="mean")
    # L1 (mean) — the module's alternate branch
    loss_l1 = pallas_get_loss(pred, target, type="L1_loss", reduction="mean")
    # sum reduction
    loss_l2_sum = pallas_get_loss(pred, target, type="L2_loss", reduction="sum")
    jax.block_until_ready((loss_l2, loss_l1, loss_l2_sum))

    ref_l2 = jnp.mean((pred - target) ** 2)
    ref_l1 = jnp.mean(jnp.abs(pred - target))
    ref_l2_sum = jnp.sum((pred - target) ** 2)
    assert jnp.allclose(loss_l2, ref_l2, rtol=1e-5, atol=1e-6), (loss_l2, ref_l2)
    assert jnp.allclose(loss_l1, ref_l1, rtol=1e-5, atol=1e-6), (loss_l1, ref_l1)
    assert jnp.allclose(loss_l2_sum, ref_l2_sum, rtol=1e-5, atol=1e-4), (loss_l2_sum, ref_l2_sum)

    # row count not a multiple of the sublane tile -> in-kernel edge-block mask
    pred_o = jax.random.normal(k3, (2, 4, 17, 16), dtype=jnp.float32)
    target_o = jax.random.normal(k4, (2, 4, 17, 16), dtype=jnp.float32)
    loss_o = pallas_get_loss(pred_o, target_o, type="L2_loss", reduction="mean")
    ref_o = jnp.mean((pred_o - target_o) ** 2)
    assert jnp.allclose(loss_o, ref_o, rtol=1e-5, atol=1e-6), (loss_o, ref_o)

    # element count not a multiple of 128 -> sliced main part + JAX tail path
    pred_t = jax.random.normal(k5, (2, 4, 15, 15), dtype=jnp.float32)
    target_t = jax.random.normal(k6, (2, 4, 15, 15), dtype=jnp.float32)
    loss_t = pallas_get_loss(pred_t, target_t, type="L1_loss", reduction="mean")
    ref_t = jnp.mean(jnp.abs(pred_t - target_t))
    assert jnp.allclose(loss_t, ref_t, rtol=1e-5, atol=1e-6), (loss_t, ref_t)

    # tiny input (< 128 elements) -> pure tail path, no kernel launch
    loss_s = pallas_get_loss(pred[:1, :1, :5, :5], target[:1, :1, :5, :5],
                             type="L2_loss", reduction="sum")
    ref_s = jnp.sum((pred[:1, :1, :5, :5] - target[:1, :1, :5, :5]) ** 2)
    assert jnp.allclose(loss_s, ref_s, rtol=1e-5, atol=1e-5), (loss_s, ref_s)

    jax.block_until_ready((loss_o, loss_t, loss_s))
    print("KERNEL_OK")
</pallas_src>

<mosaic_0001>
module attributes {stable_mosaic.version = 11 : i64} {
  func.func @_loss_kernel(%arg0: i32, %arg1: memref<16x128xf32, #tpu.memory_space<vmem>>, %arg2: memref<16x128xf32, #tpu.memory_space<vmem>>, %arg3: memref<8x128xf32, #tpu.memory_space<vmem>>, %arg4: memref<16x128xf32, #tpu.memory_space<vmem>>) attributes {dimension_semantics = [#tpu.dimension_semantics<arbitrary>], iteration_bounds = array<i64: 1>, scalar_prefetch = 0 : i64, scratch_operands = 1 : i64, tpu.core_type = #tpu.core_type<tc>, window_params = [{transform_indices = @transform_0, window_bounds = array<i64: 16, 128>}, {transform_indices = @transform_1, window_bounds = array<i64: 16, 128>}, {pipeline_mode = #tpu.pipeline_mode<synchronous>, transform_indices = @transform_2, window_bounds = array<i64: 8, 128>}]} {
    %c0_i32 = arith.constant 0 : i32
    %0 = arith.cmpi eq, %arg0, %c0_i32 : i32
    %1 = arith.extui %0 : i1 to i32
    %c0_i32_0 = arith.constant 0 : i32
    %2 = arith.cmpi ne, %1, %c0_i32_0 : i32
    scf.if %2 {
      %cst_10 = arith.constant 0.000000e+00 : f32
      %15 = vector.broadcast %cst_10 : f32 to vector<16x128xf32>
      %c0_11 = arith.constant 0 : index
      %c0_12 = arith.constant 0 : index
      %16 = vector.load %arg4[%c0_11, %c0_12] : memref<16x128xf32, #tpu.memory_space<vmem>>, vector<16x128xf32>
      tpu.vector_store %arg4[%c0_11, %c0_12], %15 {strides = array<i32>} : memref<16x128xf32, #tpu.memory_space<vmem>>, vector<16x128xf32>,
    } else {
    }
    %c0 = arith.constant 0 : index
    %c0_1 = arith.constant 0 : index
    %3 = vector.load %arg1[%c0, %c0_1] : memref<16x128xf32, #tpu.memory_space<vmem>>, vector<16x128xf32>
    %c0_2 = arith.constant 0 : index
    %c0_3 = arith.constant 0 : index
    %4 = vector.load %arg2[%c0_2, %c0_3] : memref<16x128xf32, #tpu.memory_space<vmem>>, vector<16x128xf32>
    %5 = arith.subf %3, %4 : vector<16x128xf32>
    %6 = arith.mulf %5, %5 : vector<16x128xf32>
    %c0_4 = arith.constant 0 : index
    %c0_5 = arith.constant 0 : index
    %7 = vector.load %arg4[%c0_4, %c0_5] : memref<16x128xf32, #tpu.memory_space<vmem>>, vector<16x128xf32>
    %8 = vector.shape_cast %6 : vector<16x128xf32> to vector<1x16x128xf32>
    %cst = arith.constant dense<0.000000e+00> : vector<16x128xf32>
    %9 = vector.multi_reduction <add>, %8, %cst [0] : vector<1x16x128xf32> to vector<16x128xf32>
    %10 = arith.addf %7, %9 : vector<16x128xf32>
    %c0_6 = arith.constant 0 : index
    %c0_7 = arith.constant 0 : index
    %11 = vector.load %arg4[%c0_6, %c0_7] : memref<16x128xf32, #tpu.memory_space<vmem>>, vector<16x128xf32>
    tpu.vector_store %arg4[%c0_6, %c0_7], %10 {strides = array<i32>} : memref<16x128xf32, #tpu.memory_space<vmem>>, vector<16x128xf32>,
    %c0_i32_8 = arith.constant 0 : i32
    %12 = arith.cmpi eq, %arg0, %c0_i32_8 : i32
    %13 = arith.extui %12 : i1 to i32
    %c0_i32_9 = arith.constant 0 : i32
    %14 = arith.cmpi ne, %13, %c0_i32_9 : i32
    scf.if %14 {
      %c0_10 = arith.constant 0 : index
      %c0_11 = arith.constant 0 : index
      %15 = vector.load %arg4[%c0_10, %c0_11] : memref<16x128xf32, #tpu.memory_space<vmem>>, vector<16x128xf32>
      %16 = vector.shape_cast %15 : vector<16x128xf32> to vector<2x8x128xf32>
      %cst_12 = arith.constant dense<0.000000e+00> : vector<8x128xf32>
      %17 = vector.multi_reduction <add>, %16, %cst_12 [0] : vector<2x8x128xf32> to vector<8x128xf32>
      %c0_13 = arith.constant 0 : index
      %c0_14 = arith.constant 0 : index
      %18 = vector.load %arg3[%c0_13, %c0_14] : memref<8x128xf32, #tpu.memory_space<vmem>>, vector<8x128xf32>
      tpu.vector_store %arg3[%c0_13, %c0_14], %17 {strides = array<i32>} : memref<8x128xf32, #tpu.memory_space<vmem>>, vector<8x128xf32>,
    } else {
    }
    return
  }
  func.func @transform_0(%arg0: i32) -> (i32, i32) {
    %c0_i32 = arith.constant 0 : i32
    %c0_i32_0 = arith.constant 0 : i32
    return %arg0, %c0_i32 : i32, i32
  }
  func.func @transform_1(%arg0: i32) -> (i32, i32) {
    %c0_i32 = arith.constant 0 : i32
    %c0_i32_0 = arith.constant 0 : i32
    return %arg0, %c0_i32 : i32, i32
  }
  func.func @transform_2(%arg0: i32) -> (i32, i32) {
    %c0_i32 = arith.constant 0 : i32
    %c0_i32_0 = arith.constant 0 : i32
    %c0_i32_1 = arith.constant 0 : i32
    return %c0_i32, %c0_i32_0 : i32, i32
  }
}

</mosaic_0001>

<llo_original>
// kernel: tpu_custom_call.1
$region0: #{tpu_custom_call.1}
  #allocation0 [shape = 'u32[]', space=smem, size = 0x4, offset = 0x4, fixed_abs, tag = 'smem constant byte address 0x4 - core index']
  #allocation1 [shape = 'u32[72,128]{1,0:T(1,128)}', space=vmem, size = 0x9000, scoped, tag = 'internal scratch']
  #allocation2 [shape = 'f32[16,128]{1,0:T(8,128)}', space=vmem, size = 0x2000, scoped, tag = 'scratch operand']
  %s0 = inlined_call_operand.hbm [shape: f32[16,128], index: 0, kind: input, shape index: {}]
  %s1 = inlined_call_operand.hbm [shape: f32[16,128], index: 1, kind: input, shape index: {}]
  %s2 = inlined_call_operand.hbm [shape: f32[8,128], index: 2, kind: output, shape index: {}]
  %s3 = sld [smem:[#allocation0]]
  $region34: #{tpu_custom_call.1} parent=0
    _
  %s5 = ssub.s32 1, %s3
  %s6 = scalar_select 0, %s5, %s3
  $region1: #{tpu_custom_call.1} parent=0
    #allocation3 [shape = 'u8[8192]{0}', space=vmem, size = 0x2000, scoped, tag = 'input window, operand 0, single buffered']
    #allocation4 [shape = 's32[1]{0}', space=sflag, size = 0x4, scoped, tag = 'scoped memory for tpu_custom_call.1']
    #allocation5 [shape = 's32[1]{0}', space=sflag, size = 0x4, scoped, tag = 'scoped memory for tpu_custom_call.1']
    #allocation6 [shape = 'u8[8192]{0}', space=vmem, size = 0x2000, scoped, tag = 'input window, operand 1, single buffered']
    #allocation7 [shape = 's32[1]{0}', space=sflag, size = 0x4, scoped, tag = 'scoped memory for tpu_custom_call.1']
    #allocation8 [shape = 'u8[4096]{0}', space=vmem, size = 0x1000, scoped, tag = 'output window, operand 0, single buffered']
    %7 = vsyncpa [#allocation4], 0
    %8 = vsyncpa [#allocation7], 0
    %9 = vsyncpa [#allocation5], 0
    // Predicated region
    $region2: #{tpu_custom_call.1} parent=1 // pred_check
      _
    $region3: #{tpu_custom_call.1} parent=1 // pred_check_branch
      %11 = sbr.rel (0) target = $region5
    $region4: #{tpu_custom_call.1} parent=1 // pred_region
      %13 = vsyncadd [#allocation4], 0
      %s14 = sshll.u32 %s0, 4
      %s15 = int_to_ptr.hbm [resolvable:$true] %s14
      %s16 = sshll.u32 [#allocation3], 4
      %s17 = int_to_ptr.vmem [resolvable:$true] %s16
      %22 = dma.hbm_to_vmem [thread:$0]  %s15, 256, %s17, [#allocation4], 128, 128, 8
    $region5: #{tpu_custom_call.1} parent=1 // pred_fallthru
      _
    // Predicated region
    $region6: #{tpu_custom_call.1} parent=1 // pred_check
      _
    $region7: #{tpu_custom_call.1} parent=1 // pred_check_branch
      %24 = sbr.rel (0) target = $region9
    $region8: #{tpu_custom_call.1} parent=1 // pred_region
      %26 = vsyncadd [#allocation7], 0
      %s27 = sshll.u32 %s1, 4
      %s28 = int_to_ptr.hbm [resolvable:$true] %s27
      %s29 = sshll.u32 [#allocation6], 4
      %s30 = int_to_ptr.vmem [resolvable:$true] %s29
      %35 = dma.hbm_to_vmem [thread:$0]  %s28, 256, %s30, [#allocation7], 128, 128, 8
    $region9: #{tpu_custom_call.1} parent=1 // pred_fallthru
      _
    // Predicated region
    $region10: #{tpu_custom_call.1} parent=1 // pred_check
      _
    $region11: #{tpu_custom_call.1} parent=1 // pred_check_branch
      %37 = sbr.rel (0) target = $region13
    $region12: #{tpu_custom_call.1} parent=1 // pred_region
      %39 = dma.done [#allocation4], 256
    $region13: #{tpu_custom_call.1} parent=1 // pred_fallthru
      _
    // Predicated region
    $region14: #{tpu_custom_call.1} parent=1 // pred_check
      _
    $region15: #{tpu_custom_call.1} parent=1 // pred_check_branch
      %41 = sbr.rel (0) target = $region17
    $region16: #{tpu_custom_call.1} parent=1 // pred_region
      %43 = dma.done [#allocation7], 256
    $region17: #{tpu_custom_call.1} parent=1 // pred_fallthru
      _
    %p44 = scmp.eq.s32.totalorder 0, 0
    // Predicated region
    $region18: #{tpu_custom_call.1} parent=1 // pred_check
      %p45 = pneg %p44
    $region19: #{tpu_custom_call.1} parent=1 // pred_check_branch
      %47 = sbr.rel (%p45) target = $region21
    $region20: #{tpu_custom_call.1} parent=1 // pred_region
      %48 = vst [vmem:[#allocation2] sm:$0xff] 0.0
      %49 = vst [vmem:[#allocation2 + $0x8] sm:$0xff] 0.0
    $region21: #{tpu_custom_call.1} parent=1 // pred_fallthru
      _
    %v50 = vld [vmem:[#allocation3] sm:$0xff]
    %v51 = vld [vmem:[#allocation3 + $0x8] sm:$0xff]
    %v52 = vld [vmem:[#allocation6] sm:$0xff]
    %v53 = vld [vmem:[#allocation6 + $0x8] sm:$0xff]
    %v54 = vsub.f32 %v50, %v52
    %v55 = vsub.f32 %v51, %v53
    %v56 = vmul.f32 %v54, %v54
    %v57 = vmul.f32 %v55, %v55
    %v58 = vld [vmem:[#allocation2] sm:$0xff]
    %v59 = vld [vmem:[#allocation2 + $0x8] sm:$0xff]
    %v60 = vadd.f32 %v56, 0.0
    %v61 = vadd.f32 %v57, 0.0
    %v62 = vadd.f32 %v58, %v60
    %v63 = vadd.f32 %v59, %v61
    %64 = vst [vmem:[#allocation2] sm:$0xff] %v62
    %65 = vst [vmem:[#allocation2 + $0x8] sm:$0xff] %v63
    // Predicated region
    $region22: #{tpu_custom_call.1} parent=1 // pred_check
      %p66 = pneg %p44
    $region23: #{tpu_custom_call.1} parent=1 // pred_check_branch
      %68 = sbr.rel (%p66) target = $region25
    $region24: #{tpu_custom_call.1} parent=1 // pred_region
      %v69 = vld [vmem:[#allocation2] sm:$0xff]
      %v70 = vld [vmem:[#allocation2 + $0x8] sm:$0xff]
      %v71 = vadd.f32 %v69, %v70
      %72 = vst [vmem:[#allocation8] sm:$0xff] %v71
    $region25: #{tpu_custom_call.1} parent=1 // pred_fallthru
      _
    // Predicated region
    $region26: #{tpu_custom_call.1} parent=1 // pred_check
      _
    $region27: #{tpu_custom_call.1} parent=1 // pred_check_branch
      %74 = sbr.rel (0) target = $region29
    $region28: #{tpu_custom_call.1} parent=1 // pred_region
      %76 = vsyncadd [#allocation5], 0
      %s78 = sshll.u32 [#allocation8], 4
      %s79 = int_to_ptr.vmem [resolvable:$true] %s78
      %s80 = sshll.u32 %s2, 4
      %s81 = int_to_ptr.hbm [resolvable:$true] %s80
      %83 = dma.vmem_to_hbm [thread:$0]  %s79, 128, %s81, [#allocation5]
    $region29: #{tpu_custom_call.1} parent=1 // pred_fallthru
      _
    // Predicated region
    $region30: #{tpu_custom_call.1} parent=1 // pred_check
      _
    $region31: #{tpu_custom_call.1} parent=1 // pred_check_branch
      %85 = sbr.rel (0) target = $region33
    $region32: #{tpu_custom_call.1} parent=1 // pred_region
      %87 = dma.done [#allocation5], 128
    $region33: #{tpu_custom_call.1} parent=1 // pred_fallthru
      _
    %88 = vsyncpa [#allocation4], 1
    %89 = vsyncpa [#allocation7], 1
    %90 = vsyncpa [#allocation5], 1

</llo_original>
